<compile_context>
chip_gen: v7x
topology: tpu7x:2x2x1
jax: 0.10.0
libtpu: 0.0.40
codegen_flags: <defaults>
</compile_context>

<pallas_src>
import jax
import jax.numpy as jnp
from jax.experimental import pallas as pl
from jax.experimental.pallas import tpu as pltpu

_LANE = 128      # vreg lane width
_SUBLANE = 8     # f32 sublane count
_MXU = 256       # v6e/v7x MXU edge (also a multiple of v5e's 128)


def _round_up(x, n):
    return ((x + n - 1) // n) * n


def _cdiv(a, b):
    return (a + b - 1) // b


def _vmem_capacity_bytes():
    cap = 128 << 20                    # v5e/v6e per-TC VMEM; v7x reports 64 MiB
    try:
        info = pltpu.get_tpu_info()
        cap = int(getattr(info, "vmem_capacity_bytes", cap)) or cap
    except Exception:
        pass
    return cap


def _seqwise_linear_kernel(x_ref, w_ref, b_ref, o_ref, acc_ref):
    """One (tm x tn) output tile, accumulated over the K (H_in) grid axis."""
    k = pl.program_id(2)

    @pl.when(k == 0)
    def _init():
        # Seed the f32 accumulator with the broadcast bias (folds the bias add).
        acc_ref[...] = jnp.broadcast_to(
            b_ref[...].astype(jnp.float32), acc_ref.shape)

    acc_ref[...] += jnp.dot(
        x_ref[...], w_ref[...], preferred_element_type=jnp.float32)

    @pl.when(k == pl.num_programs(2) - 1)
    def _store():
        o_ref[...] = acc_ref[...].astype(o_ref.dtype)


def _plan_tiles(m, h_in_p, h_out_p, x_isz, w_isz, budget):
    """Pick (tm, tk, tn) so weight tile + streamed x/out tiles fit `budget`."""

    def row_bytes(tk_, tn_):
        # double-buffered x + out tiles plus the f32 accumulator, per row
        return 2 * tk_ * x_isz + 2 * tn_ * x_isz + tn_ * 4

    # Prefer a fully VMEM-resident (single-buffered) weight, as long as it
    # still leaves room for an MXU-sized (256-row) streaming tile.
    tk, tn = h_in_p, h_out_p
    if tk * tn * w_isz + _MXU * row_bytes(tk, tn) > budget:
        # Tile the contraction dim first (double-buffered weight tiles), then
        # the output dim if it is still too big.
        tk = min(tk, 1024)
        while 2 * tk * tn * w_isz + _MXU * row_bytes(tk, tn) > budget and tk > _LANE:
            tk = _round_up(tk // 2, _LANE)
        while 2 * tk * tn * w_isz + _MXU * row_bytes(tk, tn) > budget and tn > _LANE:
            tn = _round_up(tn // 2, _LANE)

    resident = (tk == h_in_p and tn == h_out_p)
    w_bufs = 1 if resident else 2
    fixed = w_bufs * tk * tn * w_isz + 2 * tn * w_isz      # weight + bias bufs
    remaining = max(budget - fixed, 4 << 20)

    tm = remaining // row_bytes(tk, tn)
    tm = min(tm, 1024)                    # >=512 rows ~ 85% of HBM roofline
    if tm >= _MXU:
        tm = (tm // _MXU) * _MXU          # MXU-shaped row tiles
    else:
        tm = max(_SUBLANE, (tm // _SUBLANE) * _SUBLANE)
    # v7x megacore: keep at least 2 row tiles so the "parallel" M axis can
    # shard across the 2 TensorCores (neutral on v5e/v6e's single TC).
    if m >= 2 * _MXU and 2 * tm > m:
        tm = max(_MXU, ((m // 2) // _MXU) * _MXU)
    tm = min(tm, _round_up(m, _SUBLANE))
    return tm, tk, tn


def sequence_wise_linear(x, weight, bias):
    """SequenceWise(Linear): x (T, N, H_in) -> (T, N, H_out) = x @ W^T + b."""
    t, n, h_in = x.shape
    h_out, h_in_w = weight.shape
    assert h_in_w == h_in, "weight must be in nn.Linear (H_out, H_in) layout"
    m = t * n

    x_isz = jnp.dtype(x.dtype).itemsize
    w_isz = jnp.dtype(weight.dtype).itemsize
    b_isz = jnp.dtype(bias.dtype).itemsize

    cap = _vmem_capacity_bytes()
    budget = cap * 4 // 5                 # ~102 MiB v5e/v6e, ~51 MiB v7x
    vmem_limit = int(cap * 85 // 100)     # ~108 MiB v5e/v6e, ~54 MiB v7x

    h_in_p = _round_up(h_in, _LANE)
    h_out_p = _round_up(h_out, _LANE)
    tm, tk, tn = _plan_tiles(m, h_in_p, h_out_p, x_isz, w_isz, budget)

    # The contraction dim must be *exactly* zero-padded to a multiple of tk
    # (OOB garbage along K would corrupt valid rows).  H_out is padded to a
    # multiple of tn for lane-dense, unmasked stores.
    h_in_p = _round_up(h_in_p, tk)
    h_out_p = _round_up(h_out_p, tn)
    n_m, n_n, n_k = _cdiv(m, tm), h_out_p // tn, h_in_p // tk

    # Collapse (T, N, H) -> (T*N, H).  M is NOT padded: the ragged last row
    # tile is handled by Pallas block clamping (dead rows are never stored),
    # avoiding an extra pad + slice HBM pass over the activations.
    x2 = x.reshape(m, h_in)
    if h_in_p != h_in:
        x2 = jnp.pad(x2, ((0, 0), (0, h_in_p - h_in)))
    # One-time wrapper-side transpose to the canonical (K, N) matmul layout;
    # it is reused by every grid step, so the transpose is effectively free.
    wt = weight.T
    if (h_in_p, h_out_p) != (h_in, h_out):
        wt = jnp.pad(wt, ((0, h_in_p - h_in), (0, h_out_p - h_out)))
    b2 = bias.reshape(1, h_out)
    if h_out_p != h_out:
        b2 = jnp.pad(b2, ((0, 0), (0, h_out_p - h_out)))

    weight_passes = n_m if (n_k * n_n) > 1 else 1
    cost = pl.CostEstimate(
        flops=2 * m * h_in_p * h_out_p,
        transcendentals=0,
        bytes_accessed=int(x2.size * x_isz + wt.size * w_isz * weight_passes
                           + b2.size * b_isz + m * h_out_p * x_isz),
    )

    def build_in_specs(use_buffered):
        x_spec = pl.BlockSpec((tm, tk), lambda i, j, k: (i, k))
        w_resident = (n_k == 1 and n_n == 1)
        if use_buffered and w_resident:
            # Constant index_map -> single-buffer the resident weight
            # (halves the dominant VMEM consumer; key on v7x's 64 MiB VMEM).
            w_spec = pl.BlockSpec((tk, tn), lambda i, j, k: (k, j),
                                  pipeline_mode=pl.Buffered(1))
        else:
            w_spec = pl.BlockSpec((tk, tn), lambda i, j, k: (k, j))
        if use_buffered and n_n == 1:
            b_spec = pl.BlockSpec((1, tn), lambda i, j, k: (0, j),
                                  pipeline_mode=pl.Buffered(1))
        else:
            b_spec = pl.BlockSpec((1, tn), lambda i, j, k: (0, j))
        return [x_spec, w_spec, b_spec]

    def run(use_buffered):
        return pl.pallas_call(
            _seqwise_linear_kernel,
            out_shape=jax.ShapeDtypeStruct((m, h_out_p), x.dtype),
            grid_spec=pltpu.PrefetchScalarGridSpec(
                num_scalar_prefetch=0,
                grid=(n_m, n_n, n_k),
                in_specs=build_in_specs(use_buffered),
                out_specs=pl.BlockSpec((tm, tn), lambda i, j, k: (i, j)),
                scratch_shapes=[pltpu.VMEM((tm, tn), jnp.float32)],
            ),
            compiler_params=pltpu.CompilerParams(
                dimension_semantics=("parallel", "parallel", "arbitrary"),
                vmem_limit_bytes=vmem_limit,
            ),
            cost_estimate=cost,
        )(x2, wt, b2)

    try:
        out2 = run(use_buffered=True)
    except Exception:
        # pl.Buffered / pipeline_mode not available on this jax build: fall
        # back to default double-buffering (identical numerics).
        out2 = run(use_buffered=False)

    if h_out_p != h_out:
        out2 = out2[:, :h_out]
    return out2.reshape(t, n, h_out)


if __name__ == "__main__":
    # Small shapes consistent with the forward: T (seq) x N (batch) x H (hidden)
    T, N, H_IN, H_OUT = 8, 2, 32, 48

    key = jax.random.PRNGKey(0)
    kx, kw, kb = jax.random.split(key, 3)

    x = jax.random.normal(kx, (T, N, H_IN), dtype=jnp.float32)
    # nn.Linear parameter shapes: weight (H_out, H_in), bias (H_out,)
    bound = 1.0 / (H_IN ** 0.5)
    weight = jax.random.uniform(kw, (H_OUT, H_IN), dtype=jnp.float32,
                                minval=-bound, maxval=bound)
    bias = jax.random.uniform(kb, (H_OUT,), dtype=jnp.float32,
                              minval=-bound, maxval=bound)

    out = sequence_wise_linear(x, weight, bias)
    out = jax.block_until_ready(out)

    # Reference check (plain JAX, same semantics as the PyTorch forward).
    ref = (x.reshape(T * N, H_IN) @ weight.T + bias).reshape(T, N, H_OUT)
    assert out.shape == (T, N, H_OUT)
    assert jnp.allclose(out, ref, atol=1e-5, rtol=1e-5)

    print("KERNEL_OK")
</pallas_src>

<mosaic_0001>
module attributes {stable_mosaic.version = 11 : i64} {
  func.func @_seqwise_linear_kernel(%arg0: i32, %arg1: i32, %arg2: i32, %arg3: memref<16x128xf32, #tpu.memory_space<vmem>>, %arg4: memref<128x128xf32, #tpu.memory_space<vmem>>, %arg5: memref<1x128xf32, #tpu.memory_space<vmem>>, %arg6: memref<16x128xf32, #tpu.memory_space<vmem>>, %arg7: memref<16x128xf32, #tpu.memory_space<vmem>>) attributes {dimension_semantics = [#tpu.dimension_semantics<parallel>, #tpu.dimension_semantics<parallel>, #tpu.dimension_semantics<arbitrary>], iteration_bounds = array<i64: 1, 1, 1>, scalar_prefetch = 0 : i64, scratch_operands = 1 : i64, tpu.core_type = #tpu.core_type<tc>, window_params = [{transform_indices = @transform_0, window_bounds = array<i64: 16, 128>}, {pipeline_mode = #tpu.pipeline_mode<synchronous>, transform_indices = @transform_1, window_bounds = array<i64: 128, 128>}, {pipeline_mode = #tpu.pipeline_mode<synchronous>, transform_indices = @transform_2, window_bounds = array<i64: 1, 128>}, {transform_indices = @transform_3, window_bounds = array<i64: 16, 128>}]} {
    %c0_i32 = arith.constant 0 : i32
    %0 = arith.cmpi eq, %arg2, %c0_i32 : i32
    %1 = arith.extui %0 : i1 to i32
    %c0_i32_0 = arith.constant 0 : i32
    %2 = arith.cmpi ne, %1, %c0_i32_0 : i32
    scf.if %2 {
      %c0_10 = arith.constant 0 : index
      %c0_11 = arith.constant 0 : index
      %12 = vector.load %arg5[%c0_10, %c0_11] : memref<1x128xf32, #tpu.memory_space<vmem>>, vector<1x128xf32>
      %13 = vector.shape_cast %12 : vector<1x128xf32> to vector<1x128xf32>
      %14 = vector.broadcast %13 : vector<1x128xf32> to vector<16x128xf32>
      %c0_12 = arith.constant 0 : index
      %c0_13 = arith.constant 0 : index
      %15 = vector.load %arg7[%c0_12, %c0_13] : memref<16x128xf32, #tpu.memory_space<vmem>>, vector<16x128xf32>
      tpu.vector_store %arg7[%c0_12, %c0_13], %14 {strides = array<i32>} : memref<16x128xf32, #tpu.memory_space<vmem>>, vector<16x128xf32>,
    } else {
    }
    %c0 = arith.constant 0 : index
    %c0_1 = arith.constant 0 : index
    %3 = vector.load %arg7[%c0, %c0_1] : memref<16x128xf32, #tpu.memory_space<vmem>>, vector<16x128xf32>
    %c0_2 = arith.constant 0 : index
    %c0_3 = arith.constant 0 : index
    %4 = vector.load %arg3[%c0_2, %c0_3] : memref<16x128xf32, #tpu.memory_space<vmem>>, vector<16x128xf32>
    %c0_4 = arith.constant 0 : index
    %c0_5 = arith.constant 0 : index
    %5 = vector.load %arg4[%c0_4, %c0_5] : memref<128x128xf32, #tpu.memory_space<vmem>>, vector<128x128xf32>
    %cst = arith.constant dense<0.000000e+00> : vector<16x128xf32>
    %6 = tpu.matmul %4, %5, %cst {dimension_numbers = #tpu.dot_dimension_numbers<[1], [0], [0], [1], [0, 0, 1, 1], [], []>} : vector<16x128xf32>, vector<128x128xf32>, vector<16x128xf32> -> vector<16x128xf32>
    %7 = arith.addf %3, %6 : vector<16x128xf32>
    %c0_6 = arith.constant 0 : index
    %c0_7 = arith.constant 0 : index
    %8 = vector.load %arg7[%c0_6, %c0_7] : memref<16x128xf32, #tpu.memory_space<vmem>>, vector<16x128xf32>
    tpu.vector_store %arg7[%c0_6, %c0_7], %7 {strides = array<i32>} : memref<16x128xf32, #tpu.memory_space<vmem>>, vector<16x128xf32>,
    %c0_i32_8 = arith.constant 0 : i32
    %9 = arith.cmpi eq, %arg2, %c0_i32_8 : i32
    %10 = arith.extui %9 : i1 to i32
    %c0_i32_9 = arith.constant 0 : i32
    %11 = arith.cmpi ne, %10, %c0_i32_9 : i32
    scf.if %11 {
      %c0_10 = arith.constant 0 : index
      %c0_11 = arith.constant 0 : index
      %12 = vector.load %arg7[%c0_10, %c0_11] : memref<16x128xf32, #tpu.memory_space<vmem>>, vector<16x128xf32>
      %c0_12 = arith.constant 0 : index
      %c0_13 = arith.constant 0 : index
      %13 = vector.load %arg6[%c0_12, %c0_13] : memref<16x128xf32, #tpu.memory_space<vmem>>, vector<16x128xf32>
      tpu.vector_store %arg6[%c0_12, %c0_13], %12 {strides = array<i32>} : memref<16x128xf32, #tpu.memory_space<vmem>>, vector<16x128xf32>,
    } else {
    }
    return
  }
  func.func @transform_0(%arg0: i32, %arg1: i32, %arg2: i32) -> (i32, i32) {
    %c0_i32 = arith.constant 0 : i32
    return %arg0, %arg2 : i32, i32
  }
  func.func @transform_1(%arg0: i32, %arg1: i32, %arg2: i32) -> (i32, i32) {
    %c0_i32 = arith.constant 0 : i32
    return %arg2, %arg1 : i32, i32
  }
  func.func @transform_2(%arg0: i32, %arg1: i32, %arg2: i32) -> (i32, i32) {
    %c0_i32 = arith.constant 0 : i32
    %c0_i32_0 = arith.constant 0 : i32
    return %c0_i32, %arg1 : i32, i32
  }
  func.func @transform_3(%arg0: i32, %arg1: i32, %arg2: i32) -> (i32, i32) {
    %c0_i32 = arith.constant 0 : i32
    return %arg0, %arg1 : i32, i32
  }
}

module attributes {stable_mosaic.version = 11 : i64} {
  func.func @_seqwise_linear_kernel(%arg0: i32, %arg1: i32, %arg2: i32, %arg3: memref<16x128xf32, #tpu.memory_space<vmem>>, %arg4: memref<128x128xf32, #tpu.memory_space<vmem>>, %arg5: memref<1x128xf32, #tpu.memory_space<vmem>>, %arg6: memref<16x128xf32, #tpu.memory_space<vmem>>, %arg7: memref<16x128xf32, #tpu.memory_space<vmem>>) attributes {dimension_semantics = [#tpu.dimension_semantics<parallel>, #tpu.dimension_semantics<parallel>, #tpu.dimension_semantics<arbitrary>], iteration_bounds = array<i64: 1, 1, 1>, scalar_prefetch = 0 : i64, scratch_operands = 1 : i64, tpu.core_type = #tpu.core_type<tc>, window_params = [{transform_indices = @transform_0, window_bounds = array<i64: 16, 128>}, {transform_indices = @transform_1, window_bounds = array<i64: 128, 128>}, {transform_indices = @transform_2, window_bounds = array<i64: 1, 128>}, {transform_indices = @transform_3, window_bounds = array<i64: 16, 128>}]} {
    %c0_i32 = arith.constant 0 : i32
    %0 = arith.cmpi eq, %arg2, %c0_i32 : i32
    %1 = arith.extui %0 : i1 to i32
    %c0_i32_0 = arith.constant 0 : i32
    %2 = arith.cmpi ne, %1, %c0_i32_0 : i32
    scf.if %2 {
      %c0_10 = arith.constant 0 : index
      %c0_11 = arith.constant 0 : index
      %12 = vector.load %arg5[%c0_10, %c0_11] : memref<1x128xf32, #tpu.memory_space<vmem>>, vector<1x128xf32>
      %13 = vector.shape_cast %12 : vector<1x128xf32> to vector<1x128xf32>
      %14 = vector.broadcast %13 : vector<1x128xf32> to vector<16x128xf32>
      %c0_12 = arith.constant 0 : index
      %c0_13 = arith.constant 0 : index
      %15 = vector.load %arg7[%c0_12, %c0_13] : memref<16x128xf32, #tpu.memory_space<vmem>>, vector<16x128xf32>
      tpu.vector_store %arg7[%c0_12, %c0_13], %14 {strides = array<i32>} : memref<16x128xf32, #tpu.memory_space<vmem>>, vector<16x128xf32>,
    } else {
    }
    %c0 = arith.constant 0 : index
    %c0_1 = arith.constant 0 : index
    %3 = vector.load %arg7[%c0, %c0_1] : memref<16x128xf32, #tpu.memory_space<vmem>>, vector<16x128xf32>
    %c0_2 = arith.constant 0 : index
    %c0_3 = arith.constant 0 : index
    %4 = vector.load %arg3[%c0_2, %c0_3] : memref<16x128xf32, #tpu.memory_space<vmem>>, vector<16x128xf32>
    %c0_4 = arith.constant 0 : index
    %c0_5 = arith.constant 0 : index
    %5 = vector.load %arg4[%c0_4, %c0_5] : memref<128x128xf32, #tpu.memory_space<vmem>>, vector<128x128xf32>
    %cst = arith.constant dense<0.000000e+00> : vector<16x128xf32>
    %6 = tpu.matmul %4, %5, %cst {dimension_numbers = #tpu.dot_dimension_numbers<[1], [0], [0], [1], [0, 0, 1, 1], [], []>} : vector<16x128xf32>, vector<128x128xf32>, vector<16x128xf32> -> vector<16x128xf32>
    %7 = arith.addf %3, %6 : vector<16x128xf32>
    %c0_6 = arith.constant 0 : index
    %c0_7 = arith.constant 0 : index
    %8 = vector.load %arg7[%c0_6, %c0_7] : memref<16x128xf32, #tpu.memory_space<vmem>>, vector<16x128xf32>
    tpu.vector_store %arg7[%c0_6, %c0_7], %7 {strides = array<i32>} : memref<16x128xf32, #tpu.memory_space<vmem>>, vector<16x128xf32>,
    %c0_i32_8 = arith.constant 0 : i32
    %9 = arith.cmpi eq, %arg2, %c0_i32_8 : i32
    %10 = arith.extui %9 : i1 to i32
    %c0_i32_9 = arith.constant 0 : i32
    %11 = arith.cmpi ne, %10, %c0_i32_9 : i32
    scf.if %11 {
      %c0_10 = arith.constant 0 : index
      %c0_11 = arith.constant 0 : index
      %12 = vector.load %arg7[%c0_10, %c0_11] : memref<16x128xf32, #tpu.memory_space<vmem>>, vector<16x128xf32>
      %c0_12 = arith.constant 0 : index
      %c0_13 = arith.constant 0 : index
      %13 = vector.load %arg6[%c0_12, %c0_13] : memref<16x128xf32, #tpu.memory_space<vmem>>, vector<16x128xf32>
      tpu.vector_store %arg6[%c0_12, %c0_13], %12 {strides = array<i32>} : memref<16x128xf32, #tpu.memory_space<vmem>>, vector<16x128xf32>,
    } else {
    }
    return
  }
  func.func @transform_0(%arg0: i32, %arg1: i32, %arg2: i32) -> (i32, i32) {
    %c0_i32 = arith.constant 0 : i32
    return %arg0, %arg2 : i32, i32
  }
  func.func @transform_1(%arg0: i32, %arg1: i32, %arg2: i32) -> (i32, i32) {
    %c0_i32 = arith.constant 0 : i32
    return %arg2, %arg1 : i32, i32
  }
  func.func @transform_2(%arg0: i32, %arg1: i32, %arg2: i32) -> (i32, i32) {
    %c0_i32 = arith.constant 0 : i32
    %c0_i32_0 = arith.constant 0 : i32
    return %c0_i32, %arg1 : i32, i32
  }
  func.func @transform_3(%arg0: i32, %arg1: i32, %arg2: i32) -> (i32, i32) {
    %c0_i32 = arith.constant 0 : i32
    return %arg0, %arg1 : i32, i32
  }
}

</mosaic_0001>

<llo_original>
// kernel: tpu_custom_call.1
$region0: #{tpu_custom_call.1}
  #allocation0 [shape = 'u32[]', space=smem, size = 0x4, offset = 0x4, fixed_abs, tag = 'smem constant byte address 0x4 - core index']
  #allocation1 [shape = 'u32[144,128]{1,0:T(1,128)}', space=vmem, size = 0x12000, scoped, tag = 'internal scratch']
  #allocation2 [shape = 'f32[16,128]{1,0:T(8,128)}', space=vmem, size = 0x2000, scoped, tag = 'scratch operand']
  %s0 = inlined_call_operand.hbm [shape: f32[16,128], index: 0, kind: input, shape index: {}]
  %s1 = inlined_call_operand.hbm [shape: f32[128,128], index: 1, kind: input, shape index: {}]
  %s2 = inlined_call_operand.hbm [shape: f32[1,128], index: 2, kind: input, shape index: {}]
  %s3 = inlined_call_operand.hbm [shape: f32[16,128], index: 3, kind: output, shape index: {}]
  %s4 = sld [smem:[#allocation0]]
  $region42: #{tpu_custom_call.1} parent=0
    _
  %s6 = ssub.s32 1, %s4
  %s7 = scalar_select 0, %s6, %s4
  $region1: #{tpu_custom_call.1} parent=0
    #allocation3 [shape = 'u8[8192]{0}', space=vmem, size = 0x2000, scoped, tag = 'input window, operand 0, single buffered']
    #allocation4 [shape = 's32[1]{0}', space=sflag, size = 0x4, scoped, tag = 'scoped memory for tpu_custom_call.1']
    #allocation5 [shape = 's32[1]{0}', space=sflag, size = 0x4, scoped, tag = 'scoped memory for tpu_custom_call.1']
    #allocation6 [shape = 'u8[65536]{0}', space=vmem, size = 0x10000, scoped, tag = 'input window, operand 1, single buffered']
    #allocation7 [shape = 's32[1]{0}', space=sflag, size = 0x4, scoped, tag = 'scoped memory for tpu_custom_call.1']
    #allocation8 [shape = 'u8[512]{0}', space=vmem, size = 0x400, scoped, tag = 'input window, operand 2, single buffered']
    #allocation9 [shape = 'u8[8192]{0}', space=vmem, size = 0x2000, scoped, tag = 'output window, operand 0, single buffered']
    %8 = vsyncpa [#allocation4], 0
    %9 = vsyncpa [#allocation7], 0
    %10 = vsyncpa [#allocation5], 0
    // Predicated region
    $region2: #{tpu_custom_call.1} parent=1 // pred_check
      _
    $region3: #{tpu_custom_call.1} parent=1 // pred_check_branch
      %12 = sbr.rel (0) target = $region5
    $region4: #{tpu_custom_call.1} parent=1 // pred_region
      %s14 = ssub.s32 256, 256
      %15 = vsyncadd [#allocation4], %s14
      %s16 = sshll.u32 [#allocation3], 4
      %s17 = int_to_ptr.vmem [resolvable:$true] %s16
      %22 = dma.hbm_to_vmem [thread:$0]  %s0, 256, %s17, [#allocation4], 128, 128, 8
    $region5: #{tpu_custom_call.1} parent=1 // pred_fallthru
      _
    // Predicated region
    $region6: #{tpu_custom_call.1} parent=1 // pred_check
      _
    $region7: #{tpu_custom_call.1} parent=1 // pred_check_branch
      %24 = sbr.rel (0) target = $region9
    $region8: #{tpu_custom_call.1} parent=1 // pred_region
      %s26 = ssub.s32 2048, 2048
      %27 = vsyncadd [#allocation7], %s26
      %s28 = sshll.u32 [#allocation6], 4
      %s29 = int_to_ptr.vmem [resolvable:$true] %s28
      %34 = dma.hbm_to_vmem [thread:$0]  %s1, 2048, %s29, [#allocation7], 128, 128, 8
    $region9: #{tpu_custom_call.1} parent=1 // pred_fallthru
      _
    // Predicated region
    $region10: #{tpu_custom_call.1} parent=1 // pred_check
      _
    $region11: #{tpu_custom_call.1} parent=1 // pred_check_branch
      %36 = sbr.rel (0) target = $region13
    $region12: #{tpu_custom_call.1} parent=1 // pred_region
      %s38 = ssub.s32 16, 16
      %39 = vsyncadd [#allocation7], %s38
      %s41 = sshll.u32 [#allocation8], 4
      %s42 = int_to_ptr.vmem [resolvable:$true] %s41
      %44 = dma.hbm_to_vmem [thread:$0]  %s2, 16, %s42, [#allocation7]
    $region13: #{tpu_custom_call.1} parent=1 // pred_fallthru
      _
    // Predicated region
    $region14: #{tpu_custom_call.1} parent=1 // pred_check
      _
    $region15: #{tpu_custom_call.1} parent=1 // pred_check_branch
      %46 = sbr.rel (0) target = $region17
    $region16: #{tpu_custom_call.1} parent=1 // pred_region
      %47 = dma.done [#allocation4], 256
    $region17: #{tpu_custom_call.1} parent=1 // pred_fallthru
      _
    // Predicated region
    $region18: #{tpu_custom_call.1} parent=1 // pred_check
      _
    $region19: #{tpu_custom_call.1} parent=1 // pred_check_branch
      %49 = sbr.rel (0) target = $region21
    $region20: #{tpu_custom_call.1} parent=1 // pred_region
      %50 = dma.done [#allocation7], 2048
    $region21: #{tpu_custom_call.1} parent=1 // pred_fallthru
      _
    // Predicated region
    $region22: #{tpu_custom_call.1} parent=1 // pred_check
      _
    $region23: #{tpu_custom_call.1} parent=1 // pred_check_branch
      %52 = sbr.rel (0) target = $region25
    $region24: #{tpu_custom_call.1} parent=1 // pred_region
      %53 = dma.done [#allocation7], 16
    $region25: #{tpu_custom_call.1} parent=1 // pred_fallthru
      _
    %p54 = scmp.eq.s32.totalorder 0, 0
    // Predicated region
    $region26: #{tpu_custom_call.1} parent=1 // pred_check
      %p55 = pneg %p54
    $region27: #{tpu_custom_call.1} parent=1 // pred_check_branch
      %57 = sbr.rel (%p55) target = $region29
    $region28: #{tpu_custom_call.1} parent=1 // pred_region
      %v58 = vld [vmem:[#allocation8] sm:$0x1]
      %v60 = vlaneseq
      %v61 = vshrl.u32 %v60, 7
      %v62 = vsub.s32 0, %v61
      %v63 = vrot.slane %v58, %v62
      %65 = vst [vmem:[#allocation2] sm:$0xff] %v63
      %66 = vst [vmem:[#allocation2 + $0x8] sm:$0xff] %v63
    $region29: #{tpu_custom_call.1} parent=1 // pred_fallthru
      _
    %v67 = vld [vmem:[#allocation2] sm:$0xff]
    %v68 = vld [vmem:[#allocation2 + $0x8] sm:$0xff]
    %v69 = vld [vmem:[#allocation3] sm:$0xff]
    %v70 = vld [vmem:[#allocation3 + $0x8] sm:$0xff]
    %v71 = vld [vmem:[#allocation6] sm:$0xff]
    %v72 = vld [vmem:[#allocation6 + $0x8] sm:$0xff]
    %v73 = vld [vmem:[#allocation6 + $0x10] sm:$0xff]
    %v74 = vld [vmem:[#allocation6 + $0x18] sm:$0xff]
    %v75 = vld [vmem:[#allocation6 + $0x20] sm:$0xff]
    %v76 = vld [vmem:[#allocation6 + $0x28] sm:$0xff]
    %v77 = vld [vmem:[#allocation6 + $0x30] sm:$0xff]
    %v78 = vld [vmem:[#allocation6 + $0x38] sm:$0xff]
    %v79 = vld [vmem:[#allocation6 + $0x40] sm:$0xff]
    %v80 = vld [vmem:[#allocation6 + $0x48] sm:$0xff]
    %v81 = vld [vmem:[#allocation6 + $0x50] sm:$0xff]
    %v82 = vld [vmem:[#allocation6 + $0x58] sm:$0xff]
    %v83 = vld [vmem:[#allocation6 + $0x60] sm:$0xff]
    %v84 = vld [vmem:[#allocation6 + $0x68] sm:$0xff]
    %v85 = vld [vmem:[#allocation6 + $0x70] sm:$0xff]
    %v86 = vld [vmem:[#allocation6 + $0x78] sm:$0xff]
    %87 = vmatprep.subr.mxu0 0.0
    %88 = vmatpush1.msra.mxu0 %v71
    %89 = vmatprep.subr.mxu0 0.0
    %90 = vmatpush1.msra.mxu0 %v72
    %91 = vmatprep.subr.mxu0 0.0
    %92 = vmatpush1.msra.mxu0 %v73
    %93 = vmatprep.subr.mxu0 0.0
    %94 = vmatpush1.msra.mxu0 %v74
    %95 = vmatprep.subr.mxu0 0.0
    %96 = vmatpush1.msra.mxu0 %v75
    %97 = vmatprep.subr.mxu0 0.0
    %98 = vmatpush1.msra.mxu0 %v76
    %99 = vmatprep.subr.mxu0 0.0
    %100 = vmatpush1.msra.mxu0 %v77
    %101 = vmatprep.subr.mxu0 0.0
    %102 = vmatpush1.msra.mxu0 %v78
    %103 = vmatprep.subr.mxu0 0.0
    %104 = vmatpush1.msra.mxu0 %v79
    %105 = vmatprep.subr.mxu0 0.0
    %106 = vmatpush1.msra.mxu0 %v80
    %107 = vmatprep.subr.mxu0 0.0
    %108 = vmatpush1.msra.mxu0 %v81
    %109 = vmatprep.subr.mxu0 0.0
    %110 = vmatpush1.msra.mxu0 %v82
    %111 = vmatprep.subr.mxu0 0.0
    %112 = vmatpush1.msra.mxu0 %v83
    %113 = vmatprep.subr.mxu0 0.0
    %114 = vmatpush1.msra.mxu0 %v84
    %115 = vmatprep.subr.mxu0 0.0
    %116 = vmatpush1.msra.mxu0 %v85
    %117 = vmatprep.subr.mxu0 0.0
    %118 = vmatpush1.msra.mxu0 %v86
    %119 = vmatprep.subr.mxu0 0.0
    %120 = vmatpush1.msra.mxu0 0.0
    %121 = vmatprep.subr.mxu0 0.0
    %122 = vmatpush1.msra.mxu0 0.0
    %123 = vmatprep.subr.mxu0 0.0
    %124 = vmatpush1.msra.mxu0 0.0
    %125 = vmatprep.subr.mxu0 0.0
    %126 = vmatpush1.msra.mxu0 0.0
    %127 = vmatprep.subr.mxu0 0.0
    %128 = vmatpush1.msra.mxu0 0.0
    %129 = vmatprep.subr.mxu0 0.0
    %130 = vmatpush1.msra.mxu0 0.0
    %131 = vmatprep.subr.mxu0 0.0
    %132 = vmatpush1.msra.mxu0 0.0
    %133 = vmatprep.subr.mxu0 0.0
    %134 = vmatpush1.msra.mxu0 0.0
    %135 = vmatprep.subr.mxu0 0.0
    %136 = vmatpush1.msra.mxu0 0.0
    %137 = vmatprep.subr.mxu0 0.0
    %138 = vmatpush1.msra.mxu0 0.0
    %139 = vmatprep.subr.mxu0 0.0
    %140 = vmatpush1.msra.mxu0 0.0
    %141 = vmatprep.subr.mxu0 0.0
    %142 = vmatpush1.msra.mxu0 0.0
    %143 = vmatprep.subr.mxu0 0.0
    %144 = vmatpush1.msra.mxu0 0.0
    %145 = vmatprep.subr.mxu0 0.0
    %146 = vmatpush1.msra.mxu0 0.0
    %147 = vmatprep.subr.mxu0 0.0
    %148 = vmatpush1.msra.mxu0 0.0
    %149 = vmatprep.subr.mxu0 0.0
    %150 = vmatpush1.msra.mxu0 0.0
    %151 = vmatprep.mubr.f32.mxu0 0.0
    %152 = vmatmul.mubr.f32.gmra.mrb[0].mxu0 %v69
    %v153 = vpop.f32.mrb[0].mxu0
    %v154 = vadd.f32 0.0, %v153
    %v155 = vpop.f32.mrb[0].mxu0
    %156 = vmatprep.mubr.f32.mxu0 0.0
    %157 = vmatmul.mubr.f32.gmra.mrb[0].mxu0 %v70
    %v158 = vpop.f32.mrb[0].mxu0
    %v159 = vadd.f32 0.0, %v158
    %v160 = vpop.f32.mrb[0].mxu0
    %161 = vdwg.mxu0
    %v162 = vadd.f32 %v67, %v154
    %v163 = vadd.f32 %v68, %v159
    %164 = vst [vmem:[#allocation2] sm:$0xff] %v162
    %165 = vst [vmem:[#allocation2 + $0x8] sm:$0xff] %v163
    // Predicated region
    $region30: #{tpu_custom_call.1} parent=1 // pred_check
      %p166 = pneg %p54
    $region31: #{tpu_custom_call.1} parent=1 // pred_check_branch
      %168 = sbr.rel (%p166) target = $region33
    $region32: #{tpu_custom_call.1} parent=1 // pred_region
      %v169 = vld [vmem:[#allocation2] sm:$0xff]
      %v170 = vld [vmem:[#allocation2 + $0x8] sm:$0xff]
      %171 = vst [vmem:[#allocation9] sm:$0xff] %v169
      %172 = vst [vmem:[#allocation9 + $0x8] sm:$0xff] %v170
    $region33: #{tpu_custom_call.1} parent=1 // pred_fallthru
      _
    // Predicated region
    $region34: #{tpu_custom_call.1} parent=1 // pred_check
      _
    $region35: #{tpu_custom_call.1} parent=1 // pred_check_branch
      %174 = sbr.rel (0) target = $region37
    $region36: #{tpu_custom_call.1} parent=1 // pred_region
      %s176 = ssub.s32 256, 256
      %177 = vsyncadd [#allocation5], %s176
      %s178 = sshll.u32 [#allocation9], 4
      %s179 = int_to_ptr.vmem [resolvable:$true] %s178
      %184 = dma.vmem_to_hbm [thread:$0]  %s179, 256, %s3, [#allocation5], 128, 128, 8
    $region37: #{tpu_custom_call.1} parent=1 // pred_fallthru
      _
    // Predicated region
    $region38: #{tpu_custom_call.1} parent=1 // pred_check
      _
    $region39: #{tpu_custom_call.1} parent=1 // pred_check_branch
      %186 = sbr.rel (0) target = $region41
    $region40: #{tpu_custom_call.1} parent=1 // pred_region
      %187 = dma.done [#allocation5], 256
    $region41: #{tpu_custom_call.1} parent=1 // pred_fallthru
      _
    %188 = vsyncpa [#allocation4], 1
    %189 = vsyncpa [#allocation7], 1
    %190 = vsyncpa [#allocation5], 1

// kernel: tpu_custom_call.1
$region0: #{tpu_custom_call.1}
  #allocation0 [shape = 'u32[]', space=smem, size = 0x4, offset = 0x4, fixed_abs, tag = 'smem constant byte address 0x4 - core index']
  #allocation1 [shape = 'u32[144,128]{1,0:T(1,128)}', space=vmem, size = 0x12000, scoped, tag = 'internal scratch']
  #allocation2 [shape = 'f32[16,128]{1,0:T(8,128)}', space=vmem, size = 0x2000, scoped, tag = 'scratch operand']
  %s0 = inlined_call_operand.hbm [shape: f32[16,128], index: 0, kind: input, shape index: {}]
  %s1 = inlined_call_operand.hbm [shape: f32[128,128], index: 1, kind: input, shape index: {}]
  %s2 = inlined_call_operand.hbm [shape: f32[1,128], index: 2, kind: input, shape index: {}]
  %s3 = inlined_call_operand.hbm [shape: f32[16,128], index: 3, kind: output, shape index: {}]
  %s4 = sld [smem:[#allocation0]]
  $region42: #{tpu_custom_call.1} parent=0
    _
  %s6 = ssub.s32 1, %s4
  %s7 = scalar_select 0, %s6, %s4
  $region1: #{tpu_custom_call.1} parent=0
    #allocation3 [shape = 'u8[8192]{0}', space=vmem, size = 0x2000, scoped, tag = 'input window, operand 0, single buffered']
    #allocation4 [shape = 's32[1]{0}', space=sflag, size = 0x4, scoped, tag = 'scoped memory for tpu_custom_call.1']
    #allocation5 [shape = 's32[1]{0}', space=sflag, size = 0x4, scoped, tag = 'scoped memory for tpu_custom_call.1']
    #allocation6 [shape = 'u8[65536]{0}', space=vmem, size = 0x10000, scoped, tag = 'input window, operand 1, single buffered']
    #allocation7 [shape = 's32[1]{0}', space=sflag, size = 0x4, scoped, tag = 'scoped memory for tpu_custom_call.1']
    #allocation8 [shape = 'u8[512]{0}', space=vmem, size = 0x400, scoped, tag = 'input window, operand 2, single buffered']
    #allocation9 [shape = 'u8[8192]{0}', space=vmem, size = 0x2000, scoped, tag = 'output window, operand 0, single buffered']
    %8 = vsyncpa [#allocation4], 0
    %9 = vsyncpa [#allocation7], 0
    %10 = vsyncpa [#allocation5], 0
    // Predicated region
    $region2: #{tpu_custom_call.1} parent=1 // pred_check
      _
    $region3: #{tpu_custom_call.1} parent=1 // pred_check_branch
      %12 = sbr.rel (0) target = $region5
    $region4: #{tpu_custom_call.1} parent=1 // pred_region
      %s14 = ssub.s32 256, 256
      %15 = vsyncadd [#allocation4], %s14
      %s16 = sshll.u32 [#allocation3], 4
      %s17 = int_to_ptr.vmem [resolvable:$true] %s16
      %22 = dma.hbm_to_vmem [thread:$0]  %s0, 256, %s17, [#allocation4], 128, 128, 8
    $region5: #{tpu_custom_call.1} parent=1 // pred_fallthru
      _
    // Predicated region
    $region6: #{tpu_custom_call.1} parent=1 // pred_check
      _
    $region7: #{tpu_custom_call.1} parent=1 // pred_check_branch
      %24 = sbr.rel (0) target = $region9
    $region8: #{tpu_custom_call.1} parent=1 // pred_region
      %s26 = ssub.s32 2048, 2048
      %27 = vsyncadd [#allocation7], %s26
      %s28 = sshll.u32 [#allocation6], 4
      %s29 = int_to_ptr.vmem [resolvable:$true] %s28
      %34 = dma.hbm_to_vmem [thread:$0]  %s1, 2048, %s29, [#allocation7], 128, 128, 8
    $region9: #{tpu_custom_call.1} parent=1 // pred_fallthru
      _
    // Predicated region
    $region10: #{tpu_custom_call.1} parent=1 // pred_check
      _
    $region11: #{tpu_custom_call.1} parent=1 // pred_check_branch
      %36 = sbr.rel (0) target = $region13
    $region12: #{tpu_custom_call.1} parent=1 // pred_region
      %s38 = ssub.s32 16, 16
      %39 = vsyncadd [#allocation7], %s38
      %s41 = sshll.u32 [#allocation8], 4
      %s42 = int_to_ptr.vmem [resolvable:$true] %s41
      %44 = dma.hbm_to_vmem [thread:$0]  %s2, 16, %s42, [#allocation7]
    $region13: #{tpu_custom_call.1} parent=1 // pred_fallthru
      _
    // Predicated region
    $region14: #{tpu_custom_call.1} parent=1 // pred_check
      _
    $region15: #{tpu_custom_call.1} parent=1 // pred_check_branch
      %46 = sbr.rel (0) target = $region17
    $region16: #{tpu_custom_call.1} parent=1 // pred_region
      %47 = dma.done [#allocation4], 256
    $region17: #{tpu_custom_call.1} parent=1 // pred_fallthru
      _
    // Predicated region
    $region18: #{tpu_custom_call.1} parent=1 // pred_check
      _
    $region19: #{tpu_custom_call.1} parent=1 // pred_check_branch
      %49 = sbr.rel (0) target = $region21
    $region20: #{tpu_custom_call.1} parent=1 // pred_region
      %50 = dma.done [#allocation7], 2048
    $region21: #{tpu_custom_call.1} parent=1 // pred_fallthru
      _
    // Predicated region
    $region22: #{tpu_custom_call.1} parent=1 // pred_check
      _
    $region23: #{tpu_custom_call.1} parent=1 // pred_check_branch
      %52 = sbr.rel (0) target = $region25
    $region24: #{tpu_custom_call.1} parent=1 // pred_region
      %53 = dma.done [#allocation7], 16
    $region25: #{tpu_custom_call.1} parent=1 // pred_fallthru
      _
    %p54 = scmp.eq.s32.totalorder 0, 0
    // Predicated region
    $region26: #{tpu_custom_call.1} parent=1 // pred_check
      %p55 = pneg %p54
    $region27: #{tpu_custom_call.1} parent=1 // pred_check_branch
      %57 = sbr.rel (%p55) target = $region29
    $region28: #{tpu_custom_call.1} parent=1 // pred_region
      %v58 = vld [vmem:[#allocation8] sm:$0x1]
      %v60 = vlaneseq
      %v61 = vshrl.u32 %v60, 7
      %v62 = vsub.s32 0, %v61
      %v63 = vrot.slane %v58, %v62
      %65 = vst [vmem:[#allocation2] sm:$0xff] %v63
      %66 = vst [vmem:[#allocation2 + $0x8] sm:$0xff] %v63
    $region29: #{tpu_custom_call.1} parent=1 // pred_fallthru
      _
    %v67 = vld [vmem:[#allocation2] sm:$0xff]
    %v68 = vld [vmem:[#allocation2 + $0x8] sm:$0xff]
    %v69 = vld [vmem:[#allocation3] sm:$0xff]
    %v70 = vld [vmem:[#allocation3 + $0x8] sm:$0xff]
    %v71 = vld [vmem:[#allocation6] sm:$0xff]
    %v72 = vld [vmem:[#allocation6 + $0x8] sm:$0xff]
    %v73 = vld [vmem:[#allocation6 + $0x10] sm:$0xff]
    %v74 = vld [vmem:[#allocation6 + $0x18] sm:$0xff]
    %v75 = vld [vmem:[#allocation6 + $0x20] sm:$0xff]
    %v76 = vld [vmem:[#allocation6 + $0x28] sm:$0xff]
    %v77 = vld [vmem:[#allocation6 + $0x30] sm:$0xff]
    %v78 = vld [vmem:[#allocation6 + $0x38] sm:$0xff]
    %v79 = vld [vmem:[#allocation6 + $0x40] sm:$0xff]
    %v80 = vld [vmem:[#allocation6 + $0x48] sm:$0xff]
    %v81 = vld [vmem:[#allocation6 + $0x50] sm:$0xff]
    %v82 = vld [vmem:[#allocation6 + $0x58] sm:$0xff]
    %v83 = vld [vmem:[#allocation6 + $0x60] sm:$0xff]
    %v84 = vld [vmem:[#allocation6 + $0x68] sm:$0xff]
    %v85 = vld [vmem:[#allocation6 + $0x70] sm:$0xff]
    %v86 = vld [vmem:[#allocation6 + $0x78] sm:$0xff]
    %87 = vmatprep.subr.mxu0 0.0
    %88 = vmatpush1.msra.mxu0 %v71
    %89 = vmatprep.subr.mxu0 0.0
    %90 = vmatpush1.msra.mxu0 %v72
    %91 = vmatprep.subr.mxu0 0.0
    %92 = vmatpush1.msra.mxu0 %v73
    %93 = vmatprep.subr.mxu0 0.0
    %94 = vmatpush1.msra.mxu0 %v74
    %95 = vmatprep.subr.mxu0 0.0
    %96 = vmatpush1.msra.mxu0 %v75
    %97 = vmatprep.subr.mxu0 0.0
    %98 = vmatpush1.msra.mxu0 %v76
    %99 = vmatprep.subr.mxu0 0.0
    %100 = vmatpush1.msra.mxu0 %v77
    %101 = vmatprep.subr.mxu0 0.0
    %102 = vmatpush1.msra.mxu0 %v78
    %103 = vmatprep.subr.mxu0 0.0
    %104 = vmatpush1.msra.mxu0 %v79
    %105 = vmatprep.subr.mxu0 0.0
    %106 = vmatpush1.msra.mxu0 %v80
    %107 = vmatprep.subr.mxu0 0.0
    %108 = vmatpush1.msra.mxu0 %v81
    %109 = vmatprep.subr.mxu0 0.0
    %110 = vmatpush1.msra.mxu0 %v82
    %111 = vmatprep.subr.mxu0 0.0
    %112 = vmatpush1.msra.mxu0 %v83
    %113 = vmatprep.subr.mxu0 0.0
    %114 = vmatpush1.msra.mxu0 %v84
    %115 = vmatprep.subr.mxu0 0.0
    %116 = vmatpush1.msra.mxu0 %v85
    %117 = vmatprep.subr.mxu0 0.0
    %118 = vmatpush1.msra.mxu0 %v86
    %119 = vmatprep.subr.mxu0 0.0
    %120 = vmatpush1.msra.mxu0 0.0
    %121 = vmatprep.subr.mxu0 0.0
    %122 = vmatpush1.msra.mxu0 0.0
    %123 = vmatprep.subr.mxu0 0.0
    %124 = vmatpush1.msra.mxu0 0.0
    %125 = vmatprep.subr.mxu0 0.0
    %126 = vmatpush1.msra.mxu0 0.0
    %127 = vmatprep.subr.mxu0 0.0
    %128 = vmatpush1.msra.mxu0 0.0
    %129 = vmatprep.subr.mxu0 0.0
    %130 = vmatpush1.msra.mxu0 0.0
    %131 = vmatprep.subr.mxu0 0.0
    %132 = vmatpush1.msra.mxu0 0.0
    %133 = vmatprep.subr.mxu0 0.0
    %134 = vmatpush1.msra.mxu0 0.0
    %135 = vmatprep.subr.mxu0 0.0
    %136 = vmatpush1.msra.mxu0 0.0
    %137 = vmatprep.subr.mxu0 0.0
    %138 = vmatpush1.msra.mxu0 0.0
    %139 = vmatprep.subr.mxu0 0.0
    %140 = vmatpush1.msra.mxu0 0.0
    %141 = vmatprep.subr.mxu0 0.0
    %142 = vmatpush1.msra.mxu0 0.0
    %143 = vmatprep.subr.mxu0 0.0
    %144 = vmatpush1.msra.mxu0 0.0
    %145 = vmatprep.subr.mxu0 0.0
    %146 = vmatpush1.msra.mxu0 0.0
    %147 = vmatprep.subr.mxu0 0.0
    %148 = vmatpush1.msra.mxu0 0.0
    %149 = vmatprep.subr.mxu0 0.0
    %150 = vmatpush1.msra.mxu0 0.0
    %151 = vmatprep.mubr.f32.mxu0 0.0
    %152 = vmatmul.mubr.f32.gmra.mrb[0].mxu0 %v69
    %v153 = vpop.f32.mrb[0].mxu0
    %v154 = vadd.f32 0.0, %v153
    %v155 = vpop.f32.mrb[0].mxu0
    %156 = vmatprep.mubr.f32.mxu0 0.0
    %157 = vmatmul.mubr.f32.gmra.mrb[0].mxu0 %v70
    %v158 = vpop.f32.mrb[0].mxu0
    %v159 = vadd.f32 0.0, %v158
    %v160 = vpop.f32.mrb[0].mxu0
    %161 = vdwg.mxu0
    %v162 = vadd.f32 %v67, %v154
    %v163 = vadd.f32 %v68, %v159
    %164 = vst [vmem:[#allocation2] sm:$0xff] %v162
    %165 = vst [vmem:[#allocation2 + $0x8] sm:$0xff] %v163
    // Predicated region
    $region30: #{tpu_custom_call.1} parent=1 // pred_check
      %p166 = pneg %p54
    $region31: #{tpu_custom_call.1} parent=1 // pred_check_branch
      %168 = sbr.rel (%p166) target = $region33
    $region32: #{tpu_custom_call.1} parent=1 // pred_region
      %v169 = vld [vmem:[#allocation2] sm:$0xff]
      %v170 = vld [vmem:[#allocation2 + $0x8] sm:$0xff]
      %171 = vst [vmem:[#allocation9] sm:$0xff] %v169
      %172 = vst [vmem:[#allocation9 + $0x8] sm:$0xff] %v170
    $region33: #{tpu_custom_call.1} parent=1 // pred_fallthru
      _
    // Predicated region
    $region34: #{tpu_custom_call.1} parent=1 // pred_check
      _
    $region35: #{tpu_custom_call.1} parent=1 // pred_check_branch
      %174 = sbr.rel (0) target = $region37
    $region36: #{tpu_custom_call.1} parent=1 // pred_region
      %s176 = ssub.s32 256, 256
      %177 = vsyncadd [#allocation5], %s176
      %s178 = sshll.u32 [#allocation9], 4
      %s179 = int_to_ptr.vmem [resolvable:$true] %s178
      %184 = dma.vmem_to_hbm [thread:$0]  %s179, 256, %s3, [#allocation5], 128, 128, 8
    $region37: #{tpu_custom_call.1} parent=1 // pred_fallthru
      _
    // Predicated region
    $region38: #{tpu_custom_call.1} parent=1 // pred_check
      _
    $region39: #{tpu_custom_call.1} parent=1 // pred_check_branch
      %186 = sbr.rel (0) target = $region41
    $region40: #{tpu_custom_call.1} parent=1 // pred_region
      %187 = dma.done [#allocation5], 256
    $region41: #{tpu_custom_call.1} parent=1 // pred_fallthru
      _
    %188 = vsyncpa [#allocation4], 1
    %189 = vsyncpa [#allocation7], 1
    %190 = vsyncpa [#allocation5], 1

</llo_original>
